<compile_context>
chip_gen: v7x
topology: tpu7x:2x2x1
jax: 0.10.0
libtpu: 0.0.40
codegen_flags: <defaults>
</compile_context>

<pallas_src>
import functools

import jax
import jax.numpy as jnp
from jax import lax
from jax.experimental import pallas as pl
from jax.experimental.pallas import tpu as pltpu


def _round_up(x: int, m: int) -> int:
    return (x + m - 1) // m * m


def _make_kernel(fc1_p, fc2_p, out_size, o_b1, o_b2, o_b3, o_pa, o_pb):
    """Kernel factory closing over static row offsets into the consts vector."""

    def kernel(x_ref, w1_ref, w2_ref, w3_ref, c_ref, o_ref):
        x = x_ref[...]                                   # (tile_b, in) natural layout

        # fc1 + ReLU: contract the shared `in` axis -> (fc1_p, tile_b), lane-dense.
        h1 = lax.dot_general(w1_ref[...], x,
                             dimension_numbers=(((1,), (1,)), ((), ())),
                             preferred_element_type=jnp.float32)
        h1 = jnp.maximum(h1 + c_ref[o_b1:o_b1 + fc1_p, :], 0.0)

        # fc2 + ReLU (fc2 zero-padded to a sublane multiple in the wrapper).
        h2 = jnp.dot(w2_ref[...], h1, preferred_element_type=jnp.float32)
        h2 = jnp.maximum(h2 + c_ref[o_b2:o_b2 + fc2_p, :], 0.0)

        # fc3 (odd-row pre-scale for sigmoid-as-tanh already folded into w3/b3).
        z = jnp.dot(w3_ref[...], h2, preferred_element_type=jnp.float32)
        z = z + c_ref[o_b3:o_b3 + out_size, :]

        # even rows: tanh(z); odd rows: 0.5*(tanh(z/2)+1) == sigmoid(z)
        t = jnp.tanh(z)
        pa = c_ref[o_pa:o_pa + out_size, :]
        pb = c_ref[o_pb:o_pb + out_size, :]
        o_ref[...] = (pa * t + pb).astype(o_ref.dtype)

    return kernel


def _prepare_kernel_params(params):
    """Torch-layout params -> kernel-ready (padded, folded, consts packed)."""
    w1 = params["w1"].astype(jnp.float32)                # (fc1, in)
    b1 = params["b1"].astype(jnp.float32)                # (fc1,)
    w2 = params["w2"].astype(jnp.float32)                # (fc2, fc1)
    b2 = params["b2"].astype(jnp.float32)                # (fc2,)
    w3 = params["w3"].astype(jnp.float32)                # (out, fc2)
    b3 = params["b3"].astype(jnp.float32)                # (out,)

    fc1, fc2, out = w1.shape[0], w2.shape[0], w3.shape[0]
    fc1_p, fc2_p, out_p = _round_up(fc1, 8), _round_up(fc2, 8), _round_up(out, 8)

    # Zero-pad hidden widths to sublane multiples: exact through ReLU + zero cols.
    if fc1_p != fc1:
        w1 = jnp.pad(w1, ((0, fc1_p - fc1), (0, 0)))
        b1 = jnp.pad(b1, (0, fc1_p - fc1))
        w2 = jnp.pad(w2, ((0, 0), (0, fc1_p - fc1)))
    if fc2_p != fc2:
        w2 = jnp.pad(w2, ((0, fc2_p - fc2), (0, 0)))
        b2 = jnp.pad(b2, (0, fc2_p - fc2))
        w3 = jnp.pad(w3, ((0, 0), (0, fc2_p - fc2)))

    even = (jnp.arange(out) % 2) == 0
    pre = jnp.where(even, 1.0, 0.5).astype(jnp.float32)   # z (even) or z/2 (odd)
    pa = pre                                              # post scale
    pb = jnp.where(even, 0.0, 0.5).astype(jnp.float32)    # post shift
    w3 = w3 * pre[:, None]
    b3 = b3 * pre

    # Pack the 5 small vectors into one resident (rows, 1) array; each segment
    # is padded to a multiple of 8 rows so the static slices are tile-aligned.
    def seg(v, n):
        return jnp.pad(v, (0, n - v.shape[0]))

    consts = jnp.concatenate([seg(b1, fc1_p), seg(b2, fc2_p),
                              seg(b3, out_p), seg(pa, out_p), seg(pb, out_p)])[:, None]
    offsets = (0,                              # b1
               fc1_p,                          # b2
               fc1_p + fc2_p,                  # b3
               fc1_p + fc2_p + out_p,          # pa
               fc1_p + fc2_p + 2 * out_p)      # pb
    return w1, w2, w3, consts, offsets, (fc1_p, fc2_p, out)


@functools.partial(jax.jit, static_argnames=("tile_b", "transposed_output"))
def policy_forward(state, params, *, tile_b: int = 32768,
                   transposed_output: bool = False):
    """state: (B, input_size) f32; params: torch-layout dict (W: (out,in), b: (out,)).

    Returns (B, out) by default.  Consumers that can take the lane-dense
    (out, B) layout should pass transposed_output=True to skip one extra
    full-HBM-pass transpose in the wrapper.
    """
    B, in_size = state.shape
    w1, w2, w3, consts, off, (fc1_p, fc2_p, out_size) = _prepare_kernel_params(params)

    # --- batch tiling (all static under jit) --------------------------------
    tile_b = max(128, _round_up(tile_b, 128))
    b_pad = _round_up(B, 128)                 # output padding: <1 vreg row of waste
    tile_b = min(tile_b, b_pad)
    # Cap the double-buffered streamed footprint (~<=24 MiB: safe on v5e/v6e and
    # under v7x's 64 MiB physical VMEM).
    bytes_per_col = 4 * (in_size + out_size)
    max_tile = max(128, (24 * 1024 * 1024) // (2 * bytes_per_col) // 128 * 128)
    tile_b = min(tile_b, max_tile)
    # v7x megacore: keep >=2 grid steps whenever the batch allows so the
    # "parallel" axis actually shards across both TensorCores.
    if b_pad >= 256 and pl.cdiv(b_pad, tile_b) < 2:
        tile_b = _round_up(pl.cdiv(b_pad, 2), 128)
    n_tiles = pl.cdiv(B, tile_b)              # ragged last block is masked

    # Raise scoped VMEM only when the footprint would exceed v5e's 16 MiB default.
    step_bytes = 2 * bytes_per_col * tile_b   # double-buffered in + out tiles
    resident_bytes = 4 * (w1.size + w2.size + w3.size) + 4 * consts.shape[0] * 128
    vmem_needed = step_bytes + resident_bytes + (1 << 20)
    vmem_limit = None
    if vmem_needed > 12 * 1024 * 1024:
        vmem_limit = min(_round_up(2 * vmem_needed, 1 << 20), 56 * 1024 * 1024)

    kernel = _make_kernel(fc1_p, fc2_p, out_size, *off)

    # TODO(synk): optionally stream state/w1 as bfloat16 (f32 accumulation) to
    # halve the dominant input HBM traffic if accuracy tolerance allows.
    out_t = pl.pallas_call(
        kernel,
        out_shape=jax.ShapeDtypeStruct((out_size, b_pad), jnp.float32),
        grid=(n_tiles,),
        in_specs=[
            pl.BlockSpec((tile_b, in_size), lambda i: (i, 0)),   # streamed state
            pl.BlockSpec(w1.shape, lambda i: (0, 0)),            # resident
            pl.BlockSpec(w2.shape, lambda i: (0, 0)),            # resident
            pl.BlockSpec(w3.shape, lambda i: (0, 0)),            # resident
            pl.BlockSpec(consts.shape, lambda i: (0, 0)),        # resident
        ],
        out_specs=pl.BlockSpec((out_size, tile_b), lambda i: (0, i)),
        compiler_params=pltpu.CompilerParams(
            dimension_semantics=("parallel",),     # megacore sharding on v7x
            vmem_limit_bytes=vmem_limit,
        ),
    )(state.astype(jnp.float32), w1, w2, w3, consts)

    if transposed_output:
        return out_t[:, :B]          # (out, B), lane-dense, no extra HBM pass
    return out_t[:, :B].T            # torch layout (B, out); one extra XLA copy


def policy_forward_ref(state, params):
    """Pure-JAX reference (torch semantics) for correctness checking."""
    h1 = jnp.maximum(state @ params["w1"].T + params["b1"], 0.0)
    h2 = jnp.maximum(h1 @ params["w2"].T + params["b2"], 0.0)
    z = h2 @ params["w3"].T + params["b3"]
    col = jnp.arange(z.shape[1]) % 2
    return jnp.where(col[None, :] == 0, jnp.tanh(z), jax.nn.sigmoid(z))


def make_params(key, input_size, fc1_size, fc2_size, output_size):
    """Deterministic synthetic params in torch layout: W (out, in), b (out,)."""
    ks = jax.random.split(key, 6)
    scale = 0.1
    return {
        "w1": scale * jax.random.normal(ks[0], (fc1_size, input_size), jnp.float32),
        "b1": scale * jax.random.normal(ks[1], (fc1_size,), jnp.float32),
        "w2": scale * jax.random.normal(ks[2], (fc2_size, fc1_size), jnp.float32),
        "b2": scale * jax.random.normal(ks[3], (fc2_size,), jnp.float32),
        "w3": scale * jax.random.normal(ks[4], (output_size, fc2_size), jnp.float32),
        "b3": scale * jax.random.normal(ks[5], (output_size,), jnp.float32),
    }


if __name__ == "__main__":
    key = jax.random.PRNGKey(0)
    k_state, k_params = jax.random.split(key)

    batch = 2
    input_size = 16
    fc1_size = 8
    fc2_size = 9
    output_size = 4  # even, as the PyTorch forward loop requires

    state = jax.random.normal(k_state, (batch, input_size), jnp.float32)
    params = make_params(k_params, input_size, fc1_size, fc2_size, output_size)

    out = policy_forward(state, params)
    out = jax.block_until_ready(out)

    ref = policy_forward_ref(state, params)
    assert out.shape == (batch, output_size)
    assert jnp.allclose(out, ref, atol=1e-5, rtol=1e-5), (out, ref)

    print("KERNEL_OK")
</pallas_src>

<mosaic_0001>
module attributes {stable_mosaic.version = 11 : i64} {
  func.func @kernel(%arg0: i32, %arg1: memref<128x16xf32, #tpu.memory_space<vmem>>, %arg2: memref<8x16xf32, #tpu.memory_space<vmem>>, %arg3: memref<16x8xf32, #tpu.memory_space<vmem>>, %arg4: memref<4x16xf32, #tpu.memory_space<vmem>>, %arg5: memref<48x1xf32, #tpu.memory_space<vmem>>, %arg6: memref<4x128xf32, #tpu.memory_space<vmem>>) attributes {dimension_semantics = [#tpu.dimension_semantics<parallel>], iteration_bounds = array<i64: 1>, scalar_prefetch = 0 : i64, scratch_operands = 0 : i64, tpu.core_type = #tpu.core_type<tc>, window_params = [{transform_indices = @transform_0, window_bounds = array<i64: 128, 16>}, {pipeline_mode = #tpu.pipeline_mode<synchronous>, transform_indices = @transform_1, window_bounds = array<i64: 8, 16>}, {pipeline_mode = #tpu.pipeline_mode<synchronous>, transform_indices = @transform_2, window_bounds = array<i64: 16, 8>}, {pipeline_mode = #tpu.pipeline_mode<synchronous>, transform_indices = @transform_3, window_bounds = array<i64: 4, 16>}, {pipeline_mode = #tpu.pipeline_mode<synchronous>, transform_indices = @transform_4, window_bounds = array<i64: 48, 1>}, {transform_indices = @transform_5, window_bounds = array<i64: 4, 128>}]} {
    %c0 = arith.constant 0 : index
    %c0_0 = arith.constant 0 : index
    %0 = vector.load %arg1[%c0, %c0_0] : memref<128x16xf32, #tpu.memory_space<vmem>>, vector<128x16xf32>
    %c0_1 = arith.constant 0 : index
    %c0_2 = arith.constant 0 : index
    %1 = vector.load %arg2[%c0_1, %c0_2] : memref<8x16xf32, #tpu.memory_space<vmem>>, vector<8x16xf32>
    %cst = arith.constant dense<0.000000e+00> : vector<8x128xf32>
    %2 = tpu.matmul %1, %0, %cst {dimension_numbers = #tpu.dot_dimension_numbers<[1], [1], [0], [0], [0, 0, 1, 0], [], []>} : vector<8x16xf32>, vector<128x16xf32>, vector<8x128xf32> -> vector<8x128xf32>
    %c0_3 = arith.constant 0 : index
    %c0_4 = arith.constant 0 : index
    %3 = vector.load %arg5[%c0_3, %c0_4] : memref<48x1xf32, #tpu.memory_space<vmem>>, vector<8x1xf32>
    %4 = vector.broadcast %3 : vector<8x1xf32> to vector<8x128xf32>
    %5 = arith.addf %2, %4 : vector<8x128xf32>
    %cst_5 = arith.constant 0.000000e+00 : f32
    %6 = vector.broadcast %cst_5 : f32 to vector<8x128xf32>
    %7 = arith.maximumf %5, %6 : vector<8x128xf32>
    %c0_6 = arith.constant 0 : index
    %c0_7 = arith.constant 0 : index
    %8 = vector.load %arg3[%c0_6, %c0_7] : memref<16x8xf32, #tpu.memory_space<vmem>>, vector<16x8xf32>
    %cst_8 = arith.constant dense<0.000000e+00> : vector<16x128xf32>
    %9 = tpu.matmul %8, %7, %cst_8 {dimension_numbers = #tpu.dot_dimension_numbers<[1], [0], [0], [1], [0, 0, 1, 1], [], []>} : vector<16x8xf32>, vector<8x128xf32>, vector<16x128xf32> -> vector<16x128xf32>
    %c8 = arith.constant 8 : index
    %c0_9 = arith.constant 0 : index
    %10 = vector.load %arg5[%c8, %c0_9] : memref<48x1xf32, #tpu.memory_space<vmem>>, vector<16x1xf32>
    %11 = vector.broadcast %10 : vector<16x1xf32> to vector<16x128xf32>
    %12 = arith.addf %9, %11 : vector<16x128xf32>
    %cst_10 = arith.constant 0.000000e+00 : f32
    %13 = vector.broadcast %cst_10 : f32 to vector<16x128xf32>
    %14 = arith.maximumf %12, %13 : vector<16x128xf32>
    %c0_11 = arith.constant 0 : index
    %c0_12 = arith.constant 0 : index
    %15 = vector.load %arg4[%c0_11, %c0_12] : memref<4x16xf32, #tpu.memory_space<vmem>>, vector<4x16xf32>
    %cst_13 = arith.constant dense<0.000000e+00> : vector<4x128xf32>
    %16 = tpu.matmul %15, %14, %cst_13 {dimension_numbers = #tpu.dot_dimension_numbers<[1], [0], [0], [1], [0, 0, 1, 1], [], []>} : vector<4x16xf32>, vector<16x128xf32>, vector<4x128xf32> -> vector<4x128xf32>
    %c24 = arith.constant 24 : index
    %c0_14 = arith.constant 0 : index
    %17 = vector.load %arg5[%c24, %c0_14] : memref<48x1xf32, #tpu.memory_space<vmem>>, vector<4x1xf32>
    %18 = vector.broadcast %17 : vector<4x1xf32> to vector<4x128xf32>
    %19 = arith.addf %16, %18 : vector<4x128xf32>
    %20 = math.tanh %19 : vector<4x128xf32>
    %c32 = arith.constant 32 : index
    %c0_15 = arith.constant 0 : index
    %21 = vector.load %arg5[%c32, %c0_15] : memref<48x1xf32, #tpu.memory_space<vmem>>, vector<4x1xf32>
    %c40 = arith.constant 40 : index
    %c0_16 = arith.constant 0 : index
    %22 = vector.load %arg5[%c40, %c0_16] : memref<48x1xf32, #tpu.memory_space<vmem>>, vector<4x1xf32>
    %23 = vector.broadcast %21 : vector<4x1xf32> to vector<4x128xf32>
    %24 = arith.mulf %23, %20 : vector<4x128xf32>
    %25 = vector.broadcast %22 : vector<4x1xf32> to vector<4x128xf32>
    %26 = arith.addf %24, %25 : vector<4x128xf32>
    %c0_17 = arith.constant 0 : index
    %c0_18 = arith.constant 0 : index
    %27 = vector.load %arg6[%c0_17, %c0_18] : memref<4x128xf32, #tpu.memory_space<vmem>>, vector<4x128xf32>
    tpu.vector_store %arg6[%c0_17, %c0_18], %26 {strides = array<i32>} : memref<4x128xf32, #tpu.memory_space<vmem>>, vector<4x128xf32>,
    return
  }
  func.func @transform_0(%arg0: i32) -> (i32, i32) {
    %c0_i32 = arith.constant 0 : i32
    %c0_i32_0 = arith.constant 0 : i32
    return %arg0, %c0_i32 : i32, i32
  }
  func.func @transform_1(%arg0: i32) -> (i32, i32) {
    %c0_i32 = arith.constant 0 : i32
    %c0_i32_0 = arith.constant 0 : i32
    %c0_i32_1 = arith.constant 0 : i32
    return %c0_i32, %c0_i32_0 : i32, i32
  }
  func.func @transform_2(%arg0: i32) -> (i32, i32) {
    %c0_i32 = arith.constant 0 : i32
    %c0_i32_0 = arith.constant 0 : i32
    %c0_i32_1 = arith.constant 0 : i32
    return %c0_i32, %c0_i32_0 : i32, i32
  }
  func.func @transform_3(%arg0: i32) -> (i32, i32) {
    %c0_i32 = arith.constant 0 : i32
    %c0_i32_0 = arith.constant 0 : i32
    %c0_i32_1 = arith.constant 0 : i32
    return %c0_i32, %c0_i32_0 : i32, i32
  }
  func.func @transform_4(%arg0: i32) -> (i32, i32) {
    %c0_i32 = arith.constant 0 : i32
    %c0_i32_0 = arith.constant 0 : i32
    %c0_i32_1 = arith.constant 0 : i32
    return %c0_i32, %c0_i32_0 : i32, i32
  }
  func.func @transform_5(%arg0: i32) -> (i32, i32) {
    %c0_i32 = arith.constant 0 : i32
    %c0_i32_0 = arith.constant 0 : i32
    return %c0_i32, %arg0 : i32, i32
  }
}

</mosaic_0001>

<llo_original>
// kernel: policy_forward.1
$region0: #{policy_forward.1}
  #allocation0 [shape = 'u32[]', space=smem, size = 0x4, offset = 0x4, fixed_abs, tag = 'smem constant byte address 0x4 - core index']
  #allocation1 [shape = 'u32[144,128]{1,0:T(1,128)}', space=vmem, size = 0x12000, scoped, tag = 'internal scratch']
  %s0 = inlined_call_operand.vmem [shape: f32[2,16], index: 0, kind: input, shape index: {}]
  %s1 = inlined_call_operand.vmem [shape: f32[8,16], index: 1, kind: input, shape index: {}]
  %s2 = inlined_call_operand.vmem [shape: f32[16,8], index: 2, kind: input, shape index: {}]
  %s3 = inlined_call_operand.vmem [shape: f32[4,16], index: 3, kind: input, shape index: {}]
  %s4 = inlined_call_operand.vmem [shape: f32[48,1], index: 4, kind: input, shape index: {}]
  %s5 = inlined_call_operand.vmem [shape: f32[4,128], index: 5, kind: output, shape index: {}]
  %s6 = sld [smem:[#allocation0]]
  $region30: #{policy_forward.1} parent=0
    _
  %s8 = ssub.s32 1, %s6
  %s9 = scalar_select 0, %s8, %s6
  // Predicated region
  $region2: #{policy_forward.1} parent=0 // pred_check
    _
  $region3: #{policy_forward.1} parent=0 // pred_check_branch
    %11 = sbr.rel (0) target = $region5
  $region4: #{policy_forward.1} parent=0 // pred_region
    _
  $region5: #{policy_forward.1} parent=0 // pred_fallthru
    _
  // Predicated region
  $region6: #{policy_forward.1} parent=0 // pred_check
    _
  $region7: #{policy_forward.1} parent=0 // pred_check_branch
    %13 = sbr.rel (0) target = $region9
  $region8: #{policy_forward.1} parent=0 // pred_region
    _
  $region9: #{policy_forward.1} parent=0 // pred_fallthru
    _
  // Predicated region
  $region10: #{policy_forward.1} parent=0 // pred_check
    _
  $region11: #{policy_forward.1} parent=0 // pred_check_branch
    %15 = sbr.rel (0) target = $region13
  $region12: #{policy_forward.1} parent=0 // pred_region
    _
  $region13: #{policy_forward.1} parent=0 // pred_fallthru
    _
  // Predicated region
  $region14: #{policy_forward.1} parent=0 // pred_check
    _
  $region15: #{policy_forward.1} parent=0 // pred_check_branch
    %17 = sbr.rel (0) target = $region17
  $region16: #{policy_forward.1} parent=0 // pred_region
    _
  $region17: #{policy_forward.1} parent=0 // pred_fallthru
    _
  // Predicated region
  $region18: #{policy_forward.1} parent=0 // pred_check
    _
  $region19: #{policy_forward.1} parent=0 // pred_check_branch
    %19 = sbr.rel (0) target = $region21
  $region20: #{policy_forward.1} parent=0 // pred_region
    _
  $region21: #{policy_forward.1} parent=0 // pred_fallthru
    _
  %v20 = vld [vmem:[%s0] sm:$0xff]
  %v21 = vld [vmem:[%s0 + $0x8] sm:$0xff]
  %v22 = vld [vmem:[%s0 + $0x10] sm:$0xff]
  %v23 = vld [vmem:[%s0 + $0x18] sm:$0xff]
  %v24 = vld [vmem:[%s0 + $0x20] sm:$0xff]
  %v25 = vld [vmem:[%s0 + $0x28] sm:$0xff]
  %v26 = vld [vmem:[%s0 + $0x30] sm:$0xff]
  %v27 = vld [vmem:[%s0 + $0x38] sm:$0xff]
  %v28 = vld [vmem:[%s0 + $0x40] sm:$0xff]
  %v29 = vld [vmem:[%s0 + $0x48] sm:$0xff]
  %v30 = vld [vmem:[%s0 + $0x50] sm:$0xff]
  %v31 = vld [vmem:[%s0 + $0x58] sm:$0xff]
  %v32 = vld [vmem:[%s0 + $0x60] sm:$0xff]
  %v33 = vld [vmem:[%s0 + $0x68] sm:$0xff]
  %v34 = vld [vmem:[%s0 + $0x70] sm:$0xff]
  %v35 = vld [vmem:[%s0 + $0x78] sm:$0xff]
  %v36 = vld [vmem:[%s1] sm:$0xff]
  %v37 = vld [vmem:[%s4] sm:$0xff]
  %39 = vset.pattern.permute.xlu0 0
  %40 = vperm.xlu0 %39, %v37
  %v41 = vpop.permute.xlu0 %40
  %vm43 = vcmask 130048
  %v45 = vsel %vm43, %v36, 0
  %v48 = vsel %vm43, %v20, 0
  %v51 = vsel %vm43, %v21, 0
  %v54 = vsel %vm43, %v22, 0
  %v57 = vsel %vm43, %v23, 0
  %v60 = vsel %vm43, %v24, 0
  %v63 = vsel %vm43, %v25, 0
  %v66 = vsel %vm43, %v26, 0
  %v69 = vsel %vm43, %v27, 0
  %v72 = vsel %vm43, %v28, 0
  %v75 = vsel %vm43, %v29, 0
  %v78 = vsel %vm43, %v30, 0
  %v81 = vsel %vm43, %v31, 0
  %v84 = vsel %vm43, %v32, 0
  %v87 = vsel %vm43, %v33, 0
  %v90 = vsel %vm43, %v34, 0
  %v93 = vsel %vm43, %v35, 0
  %95 = vmatprep.subr.mxu0 0.0
  %96 = vmatpush1.xpose.msra.mxu0 %v48
  %97 = vmatprep.subr.mxu0 0.0
  %98 = vmatpush1.xpose.msra.mxu0 %v51
  %99 = vmatprep.subr.mxu0 0.0
  %100 = vmatpush1.xpose.msra.mxu0 %v54
  %101 = vmatprep.subr.mxu0 0.0
  %102 = vmatpush1.xpose.msra.mxu0 %v57
  %103 = vmatprep.subr.mxu0 0.0
  %104 = vmatpush1.xpose.msra.mxu0 %v60
  %105 = vmatprep.subr.mxu0 0.0
  %106 = vmatpush1.xpose.msra.mxu0 %v63
  %107 = vmatprep.subr.mxu0 0.0
  %108 = vmatpush1.xpose.msra.mxu0 %v66
  %109 = vmatprep.subr.mxu0 0.0
  %110 = vmatpush1.xpose.msra.mxu0 %v69
  %111 = vmatprep.subr.mxu0 0.0
  %112 = vmatpush1.xpose.msra.mxu0 %v72
  %113 = vmatprep.subr.mxu0 0.0
  %114 = vmatpush1.xpose.msra.mxu0 %v75
  %115 = vmatprep.subr.mxu0 0.0
  %116 = vmatpush1.xpose.msra.mxu0 %v78
  %117 = vmatprep.subr.mxu0 0.0
  %118 = vmatpush1.xpose.msra.mxu0 %v81
  %119 = vmatprep.subr.mxu0 0.0
  %120 = vmatpush1.xpose.msra.mxu0 %v84
  %121 = vmatprep.subr.mxu0 0.0
  %122 = vmatpush1.xpose.msra.mxu0 %v87
  %123 = vmatprep.subr.mxu0 0.0
  %124 = vmatpush1.xpose.msra.mxu0 %v90
  %125 = vmatprep.subr.mxu0 0.0
  %126 = vmatpush1.xpose.msra.mxu0 %v93
  %127 = vmatprep.subr.mxu0 0.0
  %128 = vmatpush1.xpose.msra.mxu0 0.0
  %129 = vmatprep.subr.mxu0 0.0
  %130 = vmatpush1.xpose.msra.mxu0 0.0
  %131 = vmatprep.subr.mxu0 0.0
  %132 = vmatpush1.xpose.msra.mxu0 0.0
  %133 = vmatprep.subr.mxu0 0.0
  %134 = vmatpush1.xpose.msra.mxu0 0.0
  %135 = vmatprep.subr.mxu0 0.0
  %136 = vmatpush1.xpose.msra.mxu0 0.0
  %137 = vmatprep.subr.mxu0 0.0
  %138 = vmatpush1.xpose.msra.mxu0 0.0
  %139 = vmatprep.subr.mxu0 0.0
  %140 = vmatpush1.xpose.msra.mxu0 0.0
  %141 = vmatprep.subr.mxu0 0.0
  %142 = vmatpush1.xpose.msra.mxu0 0.0
  %143 = vmatprep.subr.mxu0 0.0
  %144 = vmatpush1.xpose.msra.mxu0 0.0
  %145 = vmatprep.subr.mxu0 0.0
  %146 = vmatpush1.xpose.msra.mxu0 0.0
  %147 = vmatprep.subr.mxu0 0.0
  %148 = vmatpush1.xpose.msra.mxu0 0.0
  %149 = vmatprep.subr.mxu0 0.0
  %150 = vmatpush1.xpose.msra.mxu0 0.0
  %151 = vmatprep.subr.mxu0 0.0
  %152 = vmatpush1.xpose.msra.mxu0 0.0
  %153 = vmatprep.subr.mxu0 0.0
  %154 = vmatpush1.xpose.msra.mxu0 0.0
  %155 = vmatprep.subr.mxu0 0.0
  %156 = vmatpush1.xpose.msra.mxu0 0.0
  %157 = vmatprep.subr.mxu0 0.0
  %158 = vmatpush1.xpose.msra.mxu0 0.0
  %159 = vmatprep.mubr.f32.mxu0 0.0
  %160 = vmatmul.mubr.f32.gmra.mrb[0].mxu0 %v45
  %v161 = vpop.f32.mrb[0].mxu0
  %v162 = vadd.f32 %v41, %v161
  %v163 = vpop.f32.mrb[0].mxu0
  %164 = vdwg.mxu0
  %v165 = vmax.f32 %v162, 0.0
  %v166 = vld [vmem:[%s2] sm:$0xff]
  %v167 = vld [vmem:[%s2 + $0x8] sm:$0xff]
  %v168 = vld [vmem:[%s4 + $0x8] sm:$0xff]
  %v169 = vld [vmem:[%s4 + $0x10] sm:$0xff]
  %171 = vset.pattern.permute.xlu0 0
  %172 = vperm.xlu0 %171, %v168
  %v173 = vpop.permute.xlu0 %172
  %176 = vset.pattern.permute.xlu0 0
  %177 = vperm.xlu0 %176, %v169
  %v178 = vpop.permute.xlu0 %177
  %vm180 = vcmask 64512
  %v182 = vsel %vm180, %v166, 0
  %v185 = vsel %vm180, %v167, 0
  %187 = vmatprep.subr.mxu0 0.0
  %188 = vmatpush1.msra.mxu0 %v165
  %189 = vmatprep.subr.mxu0 0.0
  %190 = vmatpush1.msra.mxu0 0.0
  %191 = vmatprep.subr.mxu0 0.0
  %192 = vmatpush1.msra.mxu0 0.0
  %193 = vmatprep.subr.mxu0 0.0
  %194 = vmatpush1.msra.mxu0 0.0
  %195 = vmatprep.subr.mxu0 0.0
  %196 = vmatpush1.msra.mxu0 0.0
  %197 = vmatprep.subr.mxu0 0.0
  %198 = vmatpush1.msra.mxu0 0.0
  %199 = vmatprep.subr.mxu0 0.0
  %200 = vmatpush1.msra.mxu0 0.0
  %201 = vmatprep.subr.mxu0 0.0
  %202 = vmatpush1.msra.mxu0 0.0
  %203 = vmatprep.subr.mxu0 0.0
  %204 = vmatpush1.msra.mxu0 0.0
  %205 = vmatprep.subr.mxu0 0.0
  %206 = vmatpush1.msra.mxu0 0.0
  %207 = vmatprep.subr.mxu0 0.0
  %208 = vmatpush1.msra.mxu0 0.0
  %209 = vmatprep.subr.mxu0 0.0
  %210 = vmatpush1.msra.mxu0 0.0
  %211 = vmatprep.subr.mxu0 0.0
  %212 = vmatpush1.msra.mxu0 0.0
  %213 = vmatprep.subr.mxu0 0.0
  %214 = vmatpush1.msra.mxu0 0.0
  %215 = vmatprep.subr.mxu0 0.0
  %216 = vmatpush1.msra.mxu0 0.0
  %217 = vmatprep.subr.mxu0 0.0
  %218 = vmatpush1.msra.mxu0 0.0
  %219 = vmatprep.subr.mxu0 0.0
  %220 = vmatpush1.msra.mxu0 0.0
  %221 = vmatprep.subr.mxu0 0.0
  %222 = vmatpush1.msra.mxu0 0.0
  %223 = vmatprep.subr.mxu0 0.0
  %224 = vmatpush1.msra.mxu0 0.0
  %225 = vmatprep.subr.mxu0 0.0
  %226 = vmatpush1.msra.mxu0 0.0
  %227 = vmatprep.subr.mxu0 0.0
  %228 = vmatpush1.msra.mxu0 0.0
  %229 = vmatprep.subr.mxu0 0.0
  %230 = vmatpush1.msra.mxu0 0.0
  %231 = vmatprep.subr.mxu0 0.0
  %232 = vmatpush1.msra.mxu0 0.0
  %233 = vmatprep.subr.mxu0 0.0
  %234 = vmatpush1.msra.mxu0 0.0
  %235 = vmatprep.subr.mxu0 0.0
  %236 = vmatpush1.msra.mxu0 0.0
  %237 = vmatprep.subr.mxu0 0.0
  %238 = vmatpush1.msra.mxu0 0.0
  %239 = vmatprep.subr.mxu0 0.0
  %240 = vmatpush1.msra.mxu0 0.0
  %241 = vmatprep.subr.mxu0 0.0
  %242 = vmatpush1.msra.mxu0 0.0
  %243 = vmatprep.subr.mxu0 0.0
  %244 = vmatpush1.msra.mxu0 0.0
  %245 = vmatprep.subr.mxu0 0.0
  %246 = vmatpush1.msra.mxu0 0.0
  %247 = vmatprep.subr.mxu0 0.0
  %248 = vmatpush1.msra.mxu0 0.0
  %249 = vmatprep.subr.mxu0 0.0
  %250 = vmatpush1.msra.mxu0 0.0
  %251 = vmatprep.mubr.f32.mxu0 0.0
  %252 = vmatmul.mubr.f32.gmra.mrb[0].mxu0 %v182
  %v253 = vpop.f32.mrb[0].mxu0
  %v254 = vadd.f32 %v173, %v253
  %v255 = vpop.f32.mrb[0].mxu0
  %256 = vmatprep.mubr.f32.mxu0 0.0
  %257 = vmatmul.mubr.f32.gmra.mrb[0].mxu0 %v185
  %v258 = vpop.f32.mrb[0].mxu0
  %v259 = vadd.f32 %v178, %v258
  %v260 = vpop.f32.mrb[0].mxu0
  %261 = vdwg.mxu0
  %v262 = vmax.f32 %v254, 0.0
  %v263 = vmax.f32 %v259, 0.0
  %v264 = vld [vmem:[%s3] sm:$0xf]
  %v265 = vld [vmem:[%s4 + $0x18] sm:$0xf]
  %267 = vset.pattern.permute.xlu0 0
  %268 = vperm.xlu0 %267, %v265
  %v269 = vpop.permute.xlu0 %268
  %v272 = vsel %vm43, %v264, 0
  %274 = vmatprep.subr.mxu0 0.0
  %275 = vmatpush1.msra.mxu0 %v262
  %276 = vmatprep.subr.mxu0 0.0
  %277 = vmatpush1.msra.mxu0 %v263
  %278 = vmatprep.subr.mxu0 0.0
  %279 = vmatpush1.msra.mxu0 0.0
  %280 = vmatprep.subr.mxu0 0.0
  %281 = vmatpush1.msra.mxu0 0.0
  %282 = vmatprep.subr.mxu0 0.0
  %283 = vmatpush1.msra.mxu0 0.0
  %284 = vmatprep.subr.mxu0 0.0
  %285 = vmatpush1.msra.mxu0 0.0
  %286 = vmatprep.subr.mxu0 0.0
  %287 = vmatpush1.msra.mxu0 0.0
  %288 = vmatprep.subr.mxu0 0.0
  %289 = vmatpush1.msra.mxu0 0.0
  %290 = vmatprep.subr.mxu0 0.0
  %291 = vmatpush1.msra.mxu0 0.0
  %292 = vmatprep.subr.mxu0 0.0
  %293 = vmatpush1.msra.mxu0 0.0
  %294 = vmatprep.subr.mxu0 0.0
  %295 = vmatpush1.msra.mxu0 0.0
  %296 = vmatprep.subr.mxu0 0.0
  %297 = vmatpush1.msra.mxu0 0.0
  %298 = vmatprep.subr.mxu0 0.0
  %299 = vmatpush1.msra.mxu0 0.0
  %300 = vmatprep.subr.mxu0 0.0
  %301 = vmatpush1.msra.mxu0 0.0
  %302 = vmatprep.subr.mxu0 0.0
  %303 = vmatpush1.msra.mxu0 0.0
  %304 = vmatprep.subr.mxu0 0.0
  %305 = vmatpush1.msra.mxu0 0.0
  %306 = vmatprep.subr.mxu0 0.0
  %307 = vmatpush1.msra.mxu0 0.0
  %308 = vmatprep.subr.mxu0 0.0
  %309 = vmatpush1.msra.mxu0 0.0
  %310 = vmatprep.subr.mxu0 0.0
  %311 = vmatpush1.msra.mxu0 0.0
  %312 = vmatprep.subr.mxu0 0.0
  %313 = vmatpush1.msra.mxu0 0.0
  %314 = vmatprep.subr.mxu0 0.0
  %315 = vmatpush1.msra.mxu0 0.0
  %316 = vmatprep.subr.mxu0 0.0
  %317 = vmatpush1.msra.mxu0 0.0
  %318 = vmatprep.subr.mxu0 0.0
  %319 = vmatpush1.msra.mxu0 0.0
  %320 = vmatprep.subr.mxu0 0.0
  %321 = vmatpush1.msra.mxu0 0.0
  %322 = vmatprep.subr.mxu0 0.0
  %323 = vmatpush1.msra.mxu0 0.0
  %324 = vmatprep.subr.mxu0 0.0
  %325 = vmatpush1.msra.mxu0 0.0
  %326 = vmatprep.subr.mxu0 0.0
  %327 = vmatpush1.msra.mxu0 0.0
  %328 = vmatprep.subr.mxu0 0.0
  %329 = vmatpush1.msra.mxu0 0.0
  %330 = vmatprep.subr.mxu0 0.0
  %331 = vmatpush1.msra.mxu0 0.0
  %332 = vmatprep.subr.mxu0 0.0
  %333 = vmatpush1.msra.mxu0 0.0
  %334 = vmatprep.subr.mxu0 0.0
  %335 = vmatpush1.msra.mxu0 0.0
  %336 = vmatprep.subr.mxu0 0.0
  %337 = vmatpush1.msra.mxu0 0.0
  %338 = vmatprep.mubr.f32.mxu0 0.0
  %339 = vmatmul.mubr.f32.gmra.mrb[0].mxu0 %v272
  %v340 = vpop.f32.mrb[0].mxu0
  %v341 = vadd.f32 %v269, %v340
  %v342 = vpop.f32.mrb[0].mxu0
  %343 = vdwg.mxu0
  %v344 = vtanh.pop %v341
  %v345 = vld [vmem:[%s4 + $0x20] sm:$0xf]
  %v346 = vld [vmem:[%s4 + $0x28] sm:$0xf]
  %348 = vset.pattern.permute.xlu0 0
  %349 = vperm.xlu0 %348, %v345
  %v350 = vpop.permute.xlu0 %349
  %v352 = vmul.f32 %v350, %v344
  %354 = vset.pattern.permute.xlu0 0
  %355 = vperm.xlu0 %354, %v346
  %v356 = vpop.permute.xlu0 %355
  %v358 = vadd.f32 %v352, %v356
  %359 = vst [vmem:[%s5] sm:$0xf] %v358
  // Predicated region
  $region22: #{policy_forward.1} parent=0 // pred_check
    _
  $region23: #{policy_forward.1} parent=0 // pred_check_branch
    %361 = sbr.rel (0) target = $region25
  $region24: #{policy_forward.1} parent=0 // pred_region
    _
  $region25: #{policy_forward.1} parent=0 // pred_fallthru
    _
  // Predicated region
  $region26: #{policy_forward.1} parent=0 // pred_check
    _
  $region27: #{policy_forward.1} parent=0 // pred_check_branch
    %363 = sbr.rel (0) target = $region29
  $region28: #{policy_forward.1} parent=0 // pred_region
    _
  $region29: #{policy_forward.1} parent=0 // pred_fallthru
    _

</llo_original>
